<compile_context>
chip_gen: v7x
topology: tpu7x:2x2x1
jax: 0.10.0
libtpu: 0.0.40
codegen_flags: <defaults>
</compile_context>

<pallas_src>
import math
import functools

import jax
import jax.numpy as jnp
from jax import lax
from jax.experimental import pallas as pl
from jax.experimental.pallas import tpu as pltpu


def _round_up(v, m):
    return ((v + m - 1) // m) * m


def _pad2d(a, rows, cols):
    pr, pc = rows - a.shape[0], cols - a.shape[1]
    if pr == 0 and pc == 0:
        return a
    return jnp.pad(a, ((0, pr), (0, pc)))


@functools.lru_cache(maxsize=None)
def _vmem_config():
    """(tile-sizing budget, vmem_limit_bytes) chosen per TPU generation."""
    cap = None
    try:
        cap = int(pltpu.get_tpu_info().vmem_capacity_bytes)
    except Exception:
        cap = None
    if cap is None:
        try:
            kind = jax.devices()[0].device_kind.lower()
            cap = 64 * 1024 * 1024 if "7" in kind else 128 * 1024 * 1024
        except Exception:
            cap = 64 * 1024 * 1024
    if cap >= 100 * 1024 * 1024:
        # v5e / v6e: 128 MiB physical VMEM -> large tiles, explicit high limit.
        return 64 * 1024 * 1024, 96 * 1024 * 1024
    # v7x (64 MiB per TensorCore) or unknown: stay conservative.
    return 40 * 1024 * 1024, 48 * 1024 * 1024


def _lowrank_linear_kernel(x_ref, wd_ref, wu_ref, b_ref, o_ref, t_ref, *,
                           tn, wu_resident):
    # x_ref : (TM, IN)        row tile of the input (fetched once per i)
    # wd_ref: (IN, R)         W_down, resident, single-buffered
    # wu_ref: (OUT, R) or (TN, R)  W_up: fully resident or per-column tile
    # b_ref : (1, OUT)        bias, f32, resident
    # o_ref : (TM, TN)        output tile
    # t_ref : (TM, R)         VMEM scratch caching t = x @ W_down across j
    j = pl.program_id(1)

    @pl.when(j == 0)
    def _():
        t = lax.dot_general(
            x_ref[...], wd_ref[...],
            dimension_numbers=(((1,), (0,)), ((), ())),
            preferred_element_type=jnp.float32,
        )                                   # (TM, R), f32 accumulation
        t_ref[...] = t.astype(t_ref.dtype)

    if wu_resident and wu_ref.shape[0] != tn:
        start = pl.multiple_of(j * tn, tn)
        wu = wu_ref[pl.ds(start, tn), :]    # (TN, R) slice of resident W_up
    else:
        wu = wu_ref[...]                    # already the (TN, R) tile / full

    out = lax.dot_general(
        t_ref[...], wu,
        dimension_numbers=(((1,), (1,)), ((), ())),   # contract on rank
        preferred_element_type=jnp.float32,
    )                                       # (TM, TN), f32

    if b_ref.shape[1] == tn:
        b = b_ref[...]
    else:
        b_start = pl.multiple_of(j * tn, tn)
        b = b_ref[:, pl.ds(b_start, tn)]
    o_ref[...] = (out + b).astype(o_ref.dtype)


@functools.partial(jax.jit,
                   static_argnames=("compute_dtype", "vmem_budget", "vmem_limit"))
def _lowrank_linear_impl(x, w_down, w_up, bias, *,
                         compute_dtype, vmem_budget, vmem_limit):
    in_features, rank = w_down.shape
    out_features, rank_u = w_up.shape
    assert rank == rank_u
    assert x.shape[-1] == in_features

    out_dtype = x.dtype                       # module returns input precision
    cdtype = jnp.dtype(out_dtype if compute_dtype is None else compute_dtype)
    itemsize = cdtype.itemsize
    out_itemsize = jnp.dtype(out_dtype).itemsize

    lead = x.shape[:-1]
    m = int(math.prod(lead)) if lead else 1
    x2d = x.reshape(m, in_features).astype(cdtype)

    # ---- lane-dense padded geometry ---------------------------------------
    in_pad = _round_up(in_features, 128)
    r_pad = _round_up(rank, 128)
    if out_features <= 512:
        tn = _round_up(out_features, 128)
    else:
        tn = 512
    out_pad = _round_up(out_features, tn)

    # ---- VMEM-aware tile sizing -------------------------------------------
    # sub-32-bit dtypes pack rows along sublanes: align row tiles accordingly.
    row_align = max(8, 32 // itemsize)        # f32: 8, bf16: 16, int8: 32

    wu_full_bytes = out_pad * r_pad * itemsize
    wu_resident = wu_full_bytes <= vmem_budget // 3
    wu_bytes = wu_full_bytes if wu_resident else 2 * tn * r_pad * itemsize
    fixed = (in_pad * r_pad * itemsize        # W_down, single-buffered
             + wu_bytes                       # W_up (resident or 2x tile)
             + out_pad * 4)                   # bias f32, single-buffered
    per_row = (2 * in_pad * itemsize          # x, double-buffered
               + 2 * tn * out_itemsize        # out, double-buffered
               + r_pad * itemsize)            # t scratch

    tm = 512
    while tm > 64 and fixed + tm * per_row > vmem_budget:
        tm //= 2

    if m <= tm:
        tm = _round_up(max(m, 1), row_align)  # single row tile, no M waste
    else:
        # reduce pad waste, but keep tiles >= 256 (MXU is 256x256 on v6e/v7x)
        cands, c = [], tm
        while c >= max(256, row_align):
            cands.append(c)
            c //= 2
        if not cands:
            cands = [tm]
        waste = lambda t: _round_up(m, t) - m
        good = [t for t in cands if waste(t) <= 0.04 * m]
        tm = good[0] if good else min(cands, key=waste)
    m_pad = _round_up(m, tm)

    # ---- zero-pad operands (skipped when already aligned) ------------------
    x_p = _pad2d(x2d, m_pad, in_pad)
    wd_p = _pad2d(w_down.astype(cdtype), in_pad, r_pad)
    wu_p = _pad2d(w_up.astype(cdtype), out_pad, r_pad)
    b_p = _pad2d(bias.astype(jnp.float32).reshape(1, out_features), 1, out_pad)

    grid = (m_pad // tm, out_pad // tn)

    if wu_resident:
        wu_spec = pl.BlockSpec((out_pad, r_pad), lambda i, j: (0, 0),
                               pipeline_mode=pl.Buffered(1))
    else:
        wu_spec = pl.BlockSpec((tn, r_pad), lambda i, j: (j, 0))

    cost = pl.CostEstimate(
        flops=2 * m_pad * r_pad * (in_pad + out_pad),
        transcendentals=0,
        bytes_accessed=(x_p.size * itemsize
                        + wd_p.size * itemsize
                        + wu_p.size * itemsize * (1 if wu_resident else grid[0])
                        + b_p.size * 4
                        + m_pad * out_pad * out_itemsize),
    )

    kernel = functools.partial(_lowrank_linear_kernel,
                               tn=tn, wu_resident=wu_resident)

    out_p = pl.pallas_call(
        kernel,
        out_shape=jax.ShapeDtypeStruct((m_pad, out_pad), out_dtype),
        grid=grid,
        in_specs=[
            pl.BlockSpec((tm, in_pad), lambda i, j: (i, 0)),       # x row tile
            pl.BlockSpec((in_pad, r_pad), lambda i, j: (0, 0),     # W_down
                         pipeline_mode=pl.Buffered(1)),
            wu_spec,                                               # W_up
            pl.BlockSpec((1, out_pad), lambda i, j: (0, 0),        # bias (f32)
                         pipeline_mode=pl.Buffered(1)),
        ],
        out_specs=pl.BlockSpec((tm, tn), lambda i, j: (i, j)),
        scratch_shapes=[pltpu.VMEM((tm, r_pad), cdtype)],          # t cache
        compiler_params=pltpu.CompilerParams(
            # M axis parallel (v7x megacore row-sharding); N axis must be
            # sequential because the t scratch is reused across it.
            dimension_semantics=("parallel", "arbitrary"),
            vmem_limit_bytes=vmem_limit,
        ),
        cost_estimate=cost,
    )(x_p, wd_p, wu_p, b_p)

    out2d = out_p
    if m_pad != m or out_pad != out_features:
        out2d = out_p[:m, :out_features]
    return out2d.reshape(*lead, out_features)


def lowrank_linear(x, w_down, w_up, bias, compute_dtype=jnp.bfloat16):
    """x: (..., in_features) -> (..., out_features), returned in x.dtype.

    compute_dtype controls the streamed precision of x / W_down / W_up
    (default bf16: the kernel is HBM-bound on all TPU generations, so halving
    stream bytes is ~2x wall clock).  Accumulation is always f32 and the bias
    stays f32.  Pass compute_dtype=jnp.float32 (or None) for full-precision
    streams matching the PyTorch module bit-for-bit math.
    """
    budget, limit = _vmem_config()
    return _lowrank_linear_impl(x, w_down, w_up, bias,
                                compute_dtype=compute_dtype,
                                vmem_budget=budget, vmem_limit=limit)


def init_lowrank_params(key, in_features, out_features, factor=8, bias=True,
                        dtype=jnp.float32):
    """Deterministic synthetic init mimicking kaiming_uniform_(a=sqrt(5))."""
    rank = max(1, min(in_features // factor, out_features // factor))
    k_down, k_up = jax.random.split(key)

    def kaiming_uniform(k, shape):
        # fan_in = shape[1] (PyTorch convention for 2D tensors), a = sqrt(5)
        fan_in = shape[1]
        gain = math.sqrt(2.0 / (1.0 + 5.0))
        bound = gain * math.sqrt(3.0 / fan_in)
        return jax.random.uniform(k, shape, dtype=dtype, minval=-bound, maxval=bound)

    w_down = kaiming_uniform(k_down, (in_features, rank))
    w_up = kaiming_uniform(k_up, (out_features, rank))
    # Module uses a zero bias whether or not it is a learnable Parameter.
    b = jnp.zeros((out_features,), dtype=dtype)
    return w_down, w_up, b


if __name__ == "__main__":
    import numpy as np

    def ref_forward(x2d, w_down, w_up, bias):
        W = np.asarray(w_up, np.float64) @ np.asarray(w_down, np.float64).T
        return np.asarray(x2d, np.float64) @ W.T + np.asarray(bias, np.float64)

    key = jax.random.PRNGKey(0)

    # ---- test 1: module-sized small shapes ---------------------------------
    batch, seq, in_features, out_features, factor = 2, 8, 32, 64, 8
    k_param, k_x = jax.random.split(key)
    w_down, w_up, bias = init_lowrank_params(
        k_param, in_features, out_features, factor=factor, bias=True)
    x = jax.random.normal(k_x, (batch, seq, in_features), dtype=jnp.float32)

    ref = ref_forward(x.reshape(-1, in_features), w_down, w_up, bias)
    ref = ref.reshape(batch, seq, out_features)

    # default bf16 streams, f32 accumulation, f32 output
    out_bf16 = jax.block_until_ready(lowrank_linear(x, w_down, w_up, bias))
    assert out_bf16.shape == (batch, seq, out_features)
    assert out_bf16.dtype == x.dtype
    assert np.allclose(np.asarray(out_bf16, np.float64), ref, atol=5e-2, rtol=5e-2)

    # full-f32 streams
    out_f32 = jax.block_until_ready(
        lowrank_linear(x, w_down, w_up, bias, compute_dtype=jnp.float32))
    assert np.allclose(np.asarray(out_f32, np.float64), ref, atol=1e-2, rtol=1e-2)

    # ---- test 2: multiple output-column tiles (t-cache reuse + W_up slicing)
    b2, s2, in2, out2 = 4, 40, 256, 1280
    k_p2, k_x2 = jax.random.split(jax.random.PRNGKey(1))
    w_down2, w_up2, bias2 = init_lowrank_params(k_p2, in2, out2, factor=8)
    x2 = jax.random.normal(k_x2, (b2, s2, in2), dtype=jnp.float32)

    out2_k = jax.block_until_ready(lowrank_linear(x2, w_down2, w_up2, bias2))
    ref2 = ref_forward(x2.reshape(-1, in2), w_down2, w_up2, bias2).reshape(b2, s2, out2)
    assert out2_k.shape == (b2, s2, out2)
    assert np.allclose(np.asarray(out2_k, np.float64), ref2, atol=1e-1, rtol=5e-2)

    print("KERNEL_OK")
</pallas_src>

<mosaic_0001>
module attributes {stable_mosaic.version = 11 : i64} {
  func.func @_lowrank_linear_kernel(%arg0: i32, %arg1: i32, %arg2: memref<16x128xbf16, #tpu.memory_space<vmem>>, %arg3: memref<128x128xbf16, #tpu.memory_space<vmem>>, %arg4: memref<128x128xbf16, #tpu.memory_space<vmem>>, %arg5: memref<1x128xf32, #tpu.memory_space<vmem>>, %arg6: memref<16x128xf32, #tpu.memory_space<vmem>>, %arg7: memref<16x128xbf16, #tpu.memory_space<vmem>>) attributes {dimension_semantics = [#tpu.dimension_semantics<parallel>, #tpu.dimension_semantics<arbitrary>], iteration_bounds = array<i64: 1, 1>, scalar_prefetch = 0 : i64, scratch_operands = 1 : i64, tpu.core_type = #tpu.core_type<tc>, window_params = [{transform_indices = @transform_0, window_bounds = array<i64: 16, 128>}, {pipeline_mode = #tpu.pipeline_mode<synchronous>, transform_indices = @transform_1, window_bounds = array<i64: 128, 128>}, {pipeline_mode = #tpu.pipeline_mode<synchronous>, transform_indices = @transform_2, window_bounds = array<i64: 128, 128>}, {pipeline_mode = #tpu.pipeline_mode<synchronous>, transform_indices = @transform_3, window_bounds = array<i64: 1, 128>}, {transform_indices = @transform_4, window_bounds = array<i64: 16, 128>}]} {
    %c0_i32 = arith.constant 0 : i32
    %0 = arith.cmpi eq, %arg1, %c0_i32 : i32
    %1 = arith.extui %0 : i1 to i32
    %c0_i32_0 = arith.constant 0 : i32
    %2 = arith.cmpi ne, %1, %c0_i32_0 : i32
    scf.if %2 {
      %c0_8 = arith.constant 0 : index
      %c0_9 = arith.constant 0 : index
      %10 = vector.load %arg2[%c0_8, %c0_9] : memref<16x128xbf16, #tpu.memory_space<vmem>>, vector<16x128xbf16>
      %c0_10 = arith.constant 0 : index
      %c0_11 = arith.constant 0 : index
      %11 = vector.load %arg3[%c0_10, %c0_11] : memref<128x128xbf16, #tpu.memory_space<vmem>>, vector<128x128xbf16>
      %cst_12 = arith.constant dense<0.000000e+00> : vector<16x128xf32>
      %12 = tpu.matmul %10, %11, %cst_12 {dimension_numbers = #tpu.dot_dimension_numbers<[1], [0], [0], [1], [0, 0, 1, 1], [], []>} : vector<16x128xbf16>, vector<128x128xbf16>, vector<16x128xf32> -> vector<16x128xf32>
      %13 = arith.truncf %12 : vector<16x128xf32> to vector<16x128xbf16>
      %c0_13 = arith.constant 0 : index
      %c0_14 = arith.constant 0 : index
      %14 = vector.load %arg7[%c0_13, %c0_14] : memref<16x128xbf16, #tpu.memory_space<vmem>>, vector<16x128xbf16>
      tpu.vector_store %arg7[%c0_13, %c0_14], %13 {strides = array<i32>} : memref<16x128xbf16, #tpu.memory_space<vmem>>, vector<16x128xbf16>,
    } else {
    }
    %c0 = arith.constant 0 : index
    %c0_1 = arith.constant 0 : index
    %3 = vector.load %arg4[%c0, %c0_1] : memref<128x128xbf16, #tpu.memory_space<vmem>>, vector<128x128xbf16>
    %c0_2 = arith.constant 0 : index
    %c0_3 = arith.constant 0 : index
    %4 = vector.load %arg7[%c0_2, %c0_3] : memref<16x128xbf16, #tpu.memory_space<vmem>>, vector<16x128xbf16>
    %cst = arith.constant dense<0.000000e+00> : vector<16x128xf32>
    %5 = tpu.matmul %4, %3, %cst {dimension_numbers = #tpu.dot_dimension_numbers<[1], [1], [0], [0], [0, 0, 1, 0], [], []>} : vector<16x128xbf16>, vector<128x128xbf16>, vector<16x128xf32> -> vector<16x128xf32>
    %c0_4 = arith.constant 0 : index
    %c0_5 = arith.constant 0 : index
    %6 = vector.load %arg5[%c0_4, %c0_5] : memref<1x128xf32, #tpu.memory_space<vmem>>, vector<1x128xf32>
    %7 = vector.broadcast %6 : vector<1x128xf32> to vector<16x128xf32>
    %8 = arith.addf %5, %7 : vector<16x128xf32>
    %c0_6 = arith.constant 0 : index
    %c0_7 = arith.constant 0 : index
    %9 = vector.load %arg6[%c0_6, %c0_7] : memref<16x128xf32, #tpu.memory_space<vmem>>, vector<16x128xf32>
    tpu.vector_store %arg6[%c0_6, %c0_7], %8 {strides = array<i32>} : memref<16x128xf32, #tpu.memory_space<vmem>>, vector<16x128xf32>,
    return
  }
  func.func @transform_0(%arg0: i32, %arg1: i32) -> (i32, i32) {
    %c0_i32 = arith.constant 0 : i32
    %c0_i32_0 = arith.constant 0 : i32
    return %arg0, %c0_i32 : i32, i32
  }
  func.func @transform_1(%arg0: i32, %arg1: i32) -> (i32, i32) {
    %c0_i32 = arith.constant 0 : i32
    %c0_i32_0 = arith.constant 0 : i32
    %c0_i32_1 = arith.constant 0 : i32
    return %c0_i32, %c0_i32_0 : i32, i32
  }
  func.func @transform_2(%arg0: i32, %arg1: i32) -> (i32, i32) {
    %c0_i32 = arith.constant 0 : i32
    %c0_i32_0 = arith.constant 0 : i32
    %c0_i32_1 = arith.constant 0 : i32
    return %c0_i32, %c0_i32_0 : i32, i32
  }
  func.func @transform_3(%arg0: i32, %arg1: i32) -> (i32, i32) {
    %c0_i32 = arith.constant 0 : i32
    %c0_i32_0 = arith.constant 0 : i32
    %c0_i32_1 = arith.constant 0 : i32
    return %c0_i32, %c0_i32_0 : i32, i32
  }
  func.func @transform_4(%arg0: i32, %arg1: i32) -> (i32, i32) {
    %c0_i32 = arith.constant 0 : i32
    return %arg0, %arg1 : i32, i32
  }
}

</mosaic_0001>

<llo_original>
// kernel: _lowrank_linear_impl.1
$region0: #{_lowrank_linear_impl.1}
  #allocation0 [shape = 'u32[]', space=smem, size = 0x4, offset = 0x4, fixed_abs, tag = 'smem constant byte address 0x4 - core index']
  #allocation1 [shape = 'u32[144,128]{1,0:T(1,128)}', space=vmem, size = 0x12000, scoped, tag = 'internal scratch']
  #allocation2 [shape = 'bf16[16,128]{1,0:T(16,128)(2,1)}', space=vmem, size = 0x1000, scoped, tag = 'scratch operand']
  %s0 = inlined_call_operand.hbm [shape: bf16[16,128], index: 0, kind: input, shape index: {}]
  %s1 = inlined_call_operand.hbm [shape: bf16[128,128], index: 1, kind: input, shape index: {}]
  %s2 = inlined_call_operand.hbm [shape: bf16[128,128], index: 2, kind: input, shape index: {}]
  %s3 = inlined_call_operand.hbm [shape: f32[1,128], index: 3, kind: input, shape index: {}]
  %s4 = inlined_call_operand.hbm [shape: f32[16,128], index: 4, kind: output, shape index: {}]
  %s5 = sld [smem:[#allocation0]]
  $region46: #{_lowrank_linear_impl.1} parent=0
    _
  %s7 = ssub.s32 1, %s5
  %s8 = scalar_select 0, %s7, %s5
  $region1: #{_lowrank_linear_impl.1} parent=0
    #allocation3 [shape = 'u8[4096]{0}', space=vmem, size = 0x1000, scoped, tag = 'input window, operand 0, single buffered']
    #allocation4 [shape = 's32[1]{0}', space=sflag, size = 0x4, scoped, tag = 'scoped memory for _lowrank_linear_impl.1']
    #allocation5 [shape = 's32[1]{0}', space=sflag, size = 0x4, scoped, tag = 'scoped memory for _lowrank_linear_impl.1']
    #allocation6 [shape = 'u8[32768]{0}', space=vmem, size = 0x8000, scoped, tag = 'input window, operand 1, single buffered']
    #allocation7 [shape = 's32[1]{0}', space=sflag, size = 0x4, scoped, tag = 'scoped memory for _lowrank_linear_impl.1']
    #allocation8 [shape = 'u8[32768]{0}', space=vmem, size = 0x8000, scoped, tag = 'input window, operand 2, single buffered']
    #allocation9 [shape = 'u8[512]{0}', space=vmem, size = 0x400, scoped, tag = 'input window, operand 3, single buffered']
    #allocation10 [shape = 's32[1]{0}', space=sflag, size = 0x4, scoped, tag = 'scoped memory for _lowrank_linear_impl.1']
    #allocation11 [shape = 'u8[8192]{0}', space=vmem, size = 0x2000, scoped, tag = 'output window, operand 0, single buffered']
    %9 = vsyncpa [#allocation4], 0
    %10 = vsyncpa [#allocation7], 0
    %11 = vsyncpa [#allocation10], 0
    %12 = vsyncpa [#allocation5], 0
    // Predicated region
    $region2: #{_lowrank_linear_impl.1} parent=1 // pred_check
      _
    $region3: #{_lowrank_linear_impl.1} parent=1 // pred_check_branch
      %14 = sbr.rel (0) target = $region5
    $region4: #{_lowrank_linear_impl.1} parent=1 // pred_region
      %s16 = ssub.s32 128, 128
      %17 = vsyncadd [#allocation4], %s16
      %s18 = sshll.u32 [#allocation3], 4
      %s19 = int_to_ptr.vmem [resolvable:$true] %s18
      %24 = dma.hbm_to_vmem [thread:$0]  %s0, 128, %s19, [#allocation4], 64, 64, 4
    $region5: #{_lowrank_linear_impl.1} parent=1 // pred_fallthru
      _
    // Predicated region
    $region6: #{_lowrank_linear_impl.1} parent=1 // pred_check
      _
    $region7: #{_lowrank_linear_impl.1} parent=1 // pred_check_branch
      %26 = sbr.rel (0) target = $region9
    $region8: #{_lowrank_linear_impl.1} parent=1 // pred_region
      %s28 = ssub.s32 1024, 1024
      %29 = vsyncadd [#allocation7], %s28
      %s30 = sshll.u32 [#allocation6], 4
      %s31 = int_to_ptr.vmem [resolvable:$true] %s30
      %36 = dma.hbm_to_vmem [thread:$0]  %s1, 1024, %s31, [#allocation7], 64, 64, 4
    $region9: #{_lowrank_linear_impl.1} parent=1 // pred_fallthru
      _
    // Predicated region
    $region10: #{_lowrank_linear_impl.1} parent=1 // pred_check
      _
    $region11: #{_lowrank_linear_impl.1} parent=1 // pred_check_branch
      %38 = sbr.rel (0) target = $region13
    $region12: #{_lowrank_linear_impl.1} parent=1 // pred_region
      %s40 = ssub.s32 1024, 1024
      %41 = vsyncadd [#allocation7], %s40
      %s42 = sshll.u32 [#allocation8], 4
      %s43 = int_to_ptr.vmem [resolvable:$true] %s42
      %48 = dma.hbm_to_vmem [thread:$0]  %s2, 1024, %s43, [#allocation7], 64, 64, 4
    $region13: #{_lowrank_linear_impl.1} parent=1 // pred_fallthru
      _
    // Predicated region
    $region14: #{_lowrank_linear_impl.1} parent=1 // pred_check
      _
    $region15: #{_lowrank_linear_impl.1} parent=1 // pred_check_branch
      %50 = sbr.rel (0) target = $region17
    $region16: #{_lowrank_linear_impl.1} parent=1 // pred_region
      %s52 = ssub.s32 16, 16
      %53 = vsyncadd [#allocation10], %s52
      %s55 = sshll.u32 [#allocation9], 4
      %s56 = int_to_ptr.vmem [resolvable:$true] %s55
      %58 = dma.hbm_to_vmem [thread:$0]  %s3, 16, %s56, [#allocation10]
    $region17: #{_lowrank_linear_impl.1} parent=1 // pred_fallthru
      _
    // Predicated region
    $region18: #{_lowrank_linear_impl.1} parent=1 // pred_check
      _
    $region19: #{_lowrank_linear_impl.1} parent=1 // pred_check_branch
      %60 = sbr.rel (0) target = $region21
    $region20: #{_lowrank_linear_impl.1} parent=1 // pred_region
      %61 = dma.done [#allocation4], 128
    $region21: #{_lowrank_linear_impl.1} parent=1 // pred_fallthru
      _
    // Predicated region
    $region22: #{_lowrank_linear_impl.1} parent=1 // pred_check
      _
    $region23: #{_lowrank_linear_impl.1} parent=1 // pred_check_branch
      %63 = sbr.rel (0) target = $region25
    $region24: #{_lowrank_linear_impl.1} parent=1 // pred_region
      %64 = dma.done [#allocation7], 1024
    $region25: #{_lowrank_linear_impl.1} parent=1 // pred_fallthru
      _
    // Predicated region
    $region26: #{_lowrank_linear_impl.1} parent=1 // pred_check
      _
    $region27: #{_lowrank_linear_impl.1} parent=1 // pred_check_branch
      %66 = sbr.rel (0) target = $region29
    $region28: #{_lowrank_linear_impl.1} parent=1 // pred_region
      %67 = dma.done [#allocation7], 1024
    $region29: #{_lowrank_linear_impl.1} parent=1 // pred_fallthru
      _
    // Predicated region
    $region30: #{_lowrank_linear_impl.1} parent=1 // pred_check
      _
    $region31: #{_lowrank_linear_impl.1} parent=1 // pred_check_branch
      %69 = sbr.rel (0) target = $region33
    $region32: #{_lowrank_linear_impl.1} parent=1 // pred_region
      %70 = dma.done [#allocation10], 16
    $region33: #{_lowrank_linear_impl.1} parent=1 // pred_fallthru
      _
    %p72 = scmp.eq.s32.totalorder 0, 0
    // Predicated region
    $region34: #{_lowrank_linear_impl.1} parent=1 // pred_check
      %p73 = pneg %p72
    $region35: #{_lowrank_linear_impl.1} parent=1 // pred_check_branch
      %75 = sbr.rel (%p73) target = $region37
    $region36: #{_lowrank_linear_impl.1} parent=1 // pred_region
      %v76 = vld [vmem:[#allocation3] sm:$0xf]
      %v77 = vld [vmem:[#allocation3 + $0x4] sm:$0xf]
      %v78 = vld [vmem:[#allocation6] sm:$0xf]
      %v79 = vld [vmem:[#allocation6 + $0x4] sm:$0xf]
      %v80 = vld [vmem:[#allocation6 + $0x8] sm:$0xf]
      %v81 = vld [vmem:[#allocation6 + $0xc] sm:$0xf]
      %v82 = vld [vmem:[#allocation6 + $0x10] sm:$0xf]
      %v83 = vld [vmem:[#allocation6 + $0x14] sm:$0xf]
      %v84 = vld [vmem:[#allocation6 + $0x18] sm:$0xf]
      %v85 = vld [vmem:[#allocation6 + $0x1c] sm:$0xf]
      %v86 = vld [vmem:[#allocation6 + $0x20] sm:$0xf]
      %v87 = vld [vmem:[#allocation6 + $0x24] sm:$0xf]
      %v88 = vld [vmem:[#allocation6 + $0x28] sm:$0xf]
      %v89 = vld [vmem:[#allocation6 + $0x2c] sm:$0xf]
      %v90 = vld [vmem:[#allocation6 + $0x30] sm:$0xf]
      %v91 = vld [vmem:[#allocation6 + $0x34] sm:$0xf]
      %v92 = vld [vmem:[#allocation6 + $0x38] sm:$0xf]
      %v93 = vld [vmem:[#allocation6 + $0x3c] sm:$0xf]
      %v96 = vunpack.c.l.b16 %v76
      %v97 = vunpack.c.l.b16 %v77
      %v98 = vpack.c.b16 %v97, %v96
      %v116 = vunpack.c.l.b16 %v78
      %v117 = vunpack.c.l.b16 %v79
      %v118 = vunpack.c.l.b16 %v80
      %v119 = vunpack.c.l.b16 %v81
      %v120 = vunpack.c.l.b16 %v82
      %v121 = vunpack.c.l.b16 %v83
      %v122 = vunpack.c.l.b16 %v84
      %v123 = vunpack.c.l.b16 %v85
      %v124 = vunpack.c.l.b16 %v86
      %v125 = vunpack.c.l.b16 %v87
      %v126 = vunpack.c.l.b16 %v88
      %v127 = vunpack.c.l.b16 %v89
      %v128 = vunpack.c.l.b16 %v90
      %v129 = vunpack.c.l.b16 %v91
      %v130 = vunpack.c.l.b16 %v92
      %v131 = vunpack.c.l.b16 %v93
      %v132 = vpack.c.b16 %v117, %v116
      %v133 = vpack.c.b16 %v119, %v118
      %v134 = vpack.c.b16 %v121, %v120
      %v135 = vpack.c.b16 %v123, %v122
      %v136 = vpack.c.b16 %v125, %v124
      %v137 = vpack.c.b16 %v127, %v126
      %v138 = vpack.c.b16 %v129, %v128
      %v139 = vpack.c.b16 %v131, %v130
      %148 = vmatprep.subr.bf16.mxu0 0
      %149 = vmatpush1.bf16.msra.mxu0 %v132
      %150 = vmatprep.subr.bf16.mxu0 0
      %151 = vmatpush1.bf16.msra.mxu0 %v133
      %152 = vmatprep.subr.bf16.mxu0 0
      %153 = vmatpush1.bf16.msra.mxu0 %v134
      %154 = vmatprep.subr.bf16.mxu0 0
      %155 = vmatpush1.bf16.msra.mxu0 %v135
      %156 = vmatprep.subr.bf16.mxu0 0
      %157 = vmatpush1.bf16.msra.mxu0 %v136
      %158 = vmatprep.subr.bf16.mxu0 0
      %159 = vmatpush1.bf16.msra.mxu0 %v137
      %160 = vmatprep.subr.bf16.mxu0 0
      %161 = vmatpush1.bf16.msra.mxu0 %v138
      %162 = vmatprep.subr.bf16.mxu0 0
      %163 = vmatpush1.bf16.msra.mxu0 %v139
      %164 = vmatprep.subr.bf16.mxu0 0
      %165 = vmatpush1.bf16.msra.mxu0 0
      %166 = vmatprep.subr.bf16.mxu0 0
      %167 = vmatpush1.bf16.msra.mxu0 0
      %168 = vmatprep.subr.bf16.mxu0 0
      %169 = vmatpush1.bf16.msra.mxu0 0
      %170 = vmatprep.subr.bf16.mxu0 0
      %171 = vmatpush1.bf16.msra.mxu0 0
      %172 = vmatprep.subr.bf16.mxu0 0
      %173 = vmatpush1.bf16.msra.mxu0 0
      %174 = vmatprep.subr.bf16.mxu0 0
      %175 = vmatpush1.bf16.msra.mxu0 0
      %176 = vmatprep.subr.bf16.mxu0 0
      %177 = vmatpush1.bf16.msra.mxu0 0
      %178 = vmatprep.subr.bf16.mxu0 0
      %179 = vmatpush1.bf16.msra.mxu0 0
      %180 = vmatprep.mubr.bf16.mxu0 0
      %181 = vmatmul.mubr.bf16.gmra.mrb[0].mxu0 %v98
      %v182 = vpop.f32.mrb[0].mxu0
      %v183 = vadd.f32 0.0, %v182
      %v184 = vpop.f32.mrb[0].mxu0
      %v185 = vpop.f32.mrb[0].mxu0
      %v186 = vadd.f32 0.0, %v185
      %v187 = vpop.f32.mrb[0].mxu0
      %188 = vdwg.mxu0
      %v189 = vpack.c.bf16 %v186, %v183
      %190 = vst [vmem:[#allocation2] sm:$0xff] %v189
    $region37: #{_lowrank_linear_impl.1} parent=1 // pred_fallthru
      _
    %v191 = vld [vmem:[#allocation8] sm:$0xf]
    %v192 = vld [vmem:[#allocation8 + $0x4] sm:$0xf]
    %v193 = vld [vmem:[#allocation8 + $0x8] sm:$0xf]
    %v194 = vld [vmem:[#allocation8 + $0xc] sm:$0xf]
    %v195 = vld [vmem:[#allocation8 + $0x10] sm:$0xf]
    %v196 = vld [vmem:[#allocation8 + $0x14] sm:$0xf]
    %v197 = vld [vmem:[#allocation8 + $0x18] sm:$0xf]
    %v198 = vld [vmem:[#allocation8 + $0x1c] sm:$0xf]
    %v199 = vld [vmem:[#allocation8 + $0x20] sm:$0xf]
    %v200 = vld [vmem:[#allocation8 + $0x24] sm:$0xf]
    %v201 = vld [vmem:[#allocation8 + $0x28] sm:$0xf]
    %v202 = vld [vmem:[#allocation8 + $0x2c] sm:$0xf]
    %v203 = vld [vmem:[#allocation8 + $0x30] sm:$0xf]
    %v204 = vld [vmem:[#allocation8 + $0x34] sm:$0xf]
    %v205 = vld [vmem:[#allocation8 + $0x38] sm:$0xf]
    %v206 = vld [vmem:[#allocation8 + $0x3c] sm:$0xf]
    %v207 = vld [vmem:[#allocation2] sm:$0xff]
    %v208 = vld [vmem:[#allocation9] sm:$0x1]
    %v210 = vlaneseq
    %v211 = vshrl.u32 %v210, 7
    %v212 = vsub.s32 0, %v211
    %v213 = vrot.slane %v208, %v212
    %v231 = vunpack.c.l.b16 %v191
    %v232 = vunpack.c.l.b16 %v192
    %v233 = vunpack.c.l.b16 %v193
    %v234 = vunpack.c.l.b16 %v194
    %v235 = vunpack.c.l.b16 %v195
    %v236 = vunpack.c.l.b16 %v196
    %v237 = vunpack.c.l.b16 %v197
    %v238 = vunpack.c.l.b16 %v198
    %v239 = vunpack.c.l.b16 %v199
    %v240 = vunpack.c.l.b16 %v200
    %v241 = vunpack.c.l.b16 %v201
    %v242 = vunpack.c.l.b16 %v202
    %v243 = vunpack.c.l.b16 %v203
    %v244 = vunpack.c.l.b16 %v204
    %v245 = vunpack.c.l.b16 %v205
    %v246 = vunpack.c.l.b16 %v206
    %v247 = vpack.c.b16 %v232, %v231
    %v248 = vpack.c.b16 %v234, %v233
    %v249 = vpack.c.b16 %v236, %v235
    %v250 = vpack.c.b16 %v238, %v237
    %v251 = vpack.c.b16 %v240, %v239
    %v252 = vpack.c.b16 %v242, %v241
    %v253 = vpack.c.b16 %v244, %v243
    %v254 = vpack.c.b16 %v246, %v245
    %263 = vmatprep.subr.bf16.mxu0 0
    %264 = vmatpush1.bf16.xpose.msra.mxu0 %v247
    %265 = vmatprep.subr.bf16.mxu0 0
    %266 = vmatpush1.bf16.xpose.msra.mxu0 %v248
    %267 = vmatprep.subr.bf16.mxu0 0
    %268 = vmatpush1.bf16.xpose.msra.mxu0 %v249
    %269 = vmatprep.subr.bf16.mxu0 0
    %270 = vmatpush1.bf16.xpose.msra.mxu0 %v250
    %271 = vmatprep.subr.bf16.mxu0 0
    %272 = vmatpush1.bf16.xpose.msra.mxu0 %v251
    %273 = vmatprep.subr.bf16.mxu0 0
    %274 = vmatpush1.bf16.xpose.msra.mxu0 %v252
    %275 = vmatprep.subr.bf16.mxu0 0
    %276 = vmatpush1.bf16.xpose.msra.mxu0 %v253
    %277 = vmatprep.subr.bf16.mxu0 0
    %278 = vmatpush1.bf16.xpose.msra.mxu0 %v254
    %279 = vmatprep.subr.bf16.mxu0 0
    %280 = vmatpush1.bf16.xpose.msra.mxu0 0
    %281 = vmatprep.subr.bf16.mxu0 0
    %282 = vmatpush1.bf16.xpose.msra.mxu0 0
    %283 = vmatprep.subr.bf16.mxu0 0
    %284 = vmatpush1.bf16.xpose.msra.mxu0 0
    %285 = vmatprep.subr.bf16.mxu0 0
    %286 = vmatpush1.bf16.xpose.msra.mxu0 0
    %287 = vmatprep.subr.bf16.mxu0 0
    %288 = vmatpush1.bf16.xpose.msra.mxu0 0
    %289 = vmatprep.subr.bf16.mxu0 0
    %290 = vmatpush1.bf16.xpose.msra.mxu0 0
    %291 = vmatprep.subr.bf16.mxu0 0
    %292 = vmatpush1.bf16.xpose.msra.mxu0 0
    %293 = vmatprep.subr.bf16.mxu0 0
    %294 = vmatpush1.bf16.xpose.msra.mxu0 0
    %295 = vmatprep.mubr.bf16.mxu0 0
    %296 = vmatmul.mubr.bf16.gmra.mrb[0].mxu0 %v207
    %v297 = vpop.f32.mrb[0].mxu0
    %v298 = vadd.f32 %v213, %v297
    %v299 = vpop.f32.mrb[0].mxu0
    %v300 = vpop.f32.mrb[0].mxu0
    %v301 = vadd.f32 %v213, %v300
    %v302 = vpop.f32.mrb[0].mxu0
    %303 = vdwg.mxu0
    %304 = vst [vmem:[#allocation11] sm:$0xff] %v298
    %305 = vst [vmem:[#allocation11 + $0x8] sm:$0xff] %v301
    // Predicated region
    $region38: #{_lowrank_linear_impl.1} parent=1 // pred_check
      _
    $region39: #{_lowrank_linear_impl.1} parent=1 // pred_check_branch
      %307 = sbr.rel (0) target = $region41
    $region40: #{_lowrank_linear_impl.1} parent=1 // pred_region
      %s309 = ssub.s32 256, 256
      %310 = vsyncadd [#allocation5], %s309
      %s311 = sshll.u32 [#allocation11], 4
      %s312 = int_to_ptr.vmem [resolvable:$true] %s311
      %317 = dma.vmem_to_hbm [thread:$0]  %s312, 256, %s4, [#allocation5], 128, 128, 8
    $region41: #{_lowrank_linear_impl.1} parent=1 // pred_fallthru
      _
    // Predicated region
    $region42: #{_lowrank_linear_impl.1} parent=1 // pred_check
      _
    $region43: #{_lowrank_linear_impl.1} parent=1 // pred_check_branch
      %319 = sbr.rel (0) target = $region45
    $region44: #{_lowrank_linear_impl.1} parent=1 // pred_region
      %320 = dma.done [#allocation5], 256
    $region45: #{_lowrank_linear_impl.1} parent=1 // pred_fallthru
      _
    %321 = vsyncpa [#allocation4], 1
    %322 = vsyncpa [#allocation7], 1
    %323 = vsyncpa [#allocation10], 1
    %324 = vsyncpa [#allocation5], 1

</llo_original>
